<compile_context>
chip_gen: v6e
topology: v6e:2x2x1
jax: 0.10.0
libtpu: 0.0.40
codegen_flags: <defaults>
</compile_context>

<pallas_src>
import jax
import jax.numpy as jnp
from jax.experimental import pallas as pl
from jax.experimental.pallas import tpu as pltpu

_NEG_BIG = -1e30  # pad-class bias; exp(logit - rowmax) underflows to exactly 0


def _round_up(x, m):
    return ((x + m - 1) // m) * m


def _lr_kernel(x_ref, w_ref, b_ref, o_ref, acc_ref):
    # x_ref:   (tile_b, tile_k) bf16
    # w_ref:   (tile_k, c_pad)  bf16   (classes zero-padded to lane-dense width)
    # b_ref:   (1, c_pad)       f32    (padded class lanes hold -1e30)
    # o_ref:   (tile_b, n_class) final dtype  -- only the real classes
    # acc_ref: (tile_b, c_pad)  f32 accumulator scratch
    k = pl.program_id(1)

    @pl.when(k == 0)
    def _init():
        acc_ref[...] = jnp.zeros_like(acc_ref)

    # bf16 x bf16 -> f32 accumulate on the MXU.
    acc_ref[...] += jnp.dot(x_ref[...], w_ref[...],
                            preferred_element_type=jnp.float32)

    @pl.when(k == pl.num_programs(1) - 1)
    def _softmax_epilogue():
        logits = acc_ref[...] + b_ref[...]           # padded classes -> -1e30
        m = jnp.max(logits, axis=-1, keepdims=True)
        e = jnp.exp(logits - m)                      # padded classes -> exactly 0
        denom = jnp.sum(e, axis=-1, keepdims=True)
        r = pl.reciprocal(denom, approx=True)        # EUP slot
        r = r * (2.0 - denom * r)                    # one Newton step -> near-exact
        probs = e * r
        # Store only the real classes (masked vst, but 64x fewer bytes when
        # n_class << 128); dtype already the final output dtype.
        o_ref[...] = probs[:, : o_ref.shape[-1]].astype(o_ref.dtype)


def prepare_params(weight, bias, *, max_tile_k=512):
    """Pad/cast nn.Linear parameters ONCE (cache across forward calls).

    weight: (n_class, input_dim)  -- nn.Linear.weight convention
    bias:   (n_class,)
    """
    n_class, input_dim = weight.shape
    c_pad = _round_up(n_class, 128)

    # Even-split the K (input_dim) axis into lane-dense tiles of <= max_tile_k.
    nk = max(1, pl.cdiv(input_dim, max_tile_k))
    tile_k = _round_up(pl.cdiv(input_dim, nk), 128)
    k_pad = nk * tile_k

    w_t = jnp.zeros((k_pad, c_pad), jnp.bfloat16)
    w_t = w_t.at[:input_dim, :n_class].set(weight.T.astype(jnp.bfloat16))

    b2d = jnp.full((1, c_pad), _NEG_BIG, jnp.float32)  # must stay f32 in-kernel
    b2d = b2d.at[0, :n_class].set(bias.astype(jnp.float32))

    return dict(w_t=w_t, b2d=b2d, n_class=n_class, input_dim=input_dim,
                tile_k=tile_k, nk=nk)


def logistic_regression_forward(x, params):
    """softmax(x @ W^T + b, axis=-1); x: (batch, input_dim)."""
    w_t, b2d = params["w_t"], params["b2d"]
    n_class, input_dim = params["n_class"], params["input_dim"]
    tile_k, nk = params["tile_k"], params["nk"]
    k_pad, c_pad = w_t.shape

    batch = x.shape[0]

    # Even-split batch tiles (<=512 rows, multiple of 16 for bf16 sublanes).
    nb = max(1, pl.cdiv(batch, 512))
    if batch >= 128:
        nb = max(nb, 2)  # give both v7x TensorCores work on moderate batches
    # TODO(synk): consider pltpu.CORE_PARALLEL / pl.core_map if plain "parallel"
    # does not shard the batch axis across v7x TensorCores.
    tile_b = _round_up(pl.cdiv(batch, nb), 16)

    # Per-step VMEM footprint (bytes); shrink tile_b if it would not fit.
    def footprint(tb):
        x_bytes = 2 * tb * tile_k * 2                      # double-buffered bf16 x
        w_bufs = 1 if nk == 1 else 2                       # Buffered(1) when constant
        w_bytes = w_bufs * tile_k * c_pad * 2
        b_bytes = 8 * c_pad * 4
        o_bytes = 2 * tb * c_pad * 4                       # lane-padded out buffers
        acc_bytes = tb * c_pad * 4
        return x_bytes + w_bytes + b_bytes + o_bytes + acc_bytes

    VMEM_BUDGET = 48 << 20  # conservative: fits v7x's 64 MiB physical VMEM
    while tile_b > 16 and footprint(tile_b) > VMEM_BUDGET:
        tile_b = _round_up(tile_b // 2, 16)
    nb = pl.cdiv(batch, tile_b)
    b_pad = nb * tile_b
    # TODO(synk): also tile the class axis when n_class is vocab-sized.

    vmem_limit = int(min(max(2 * footprint(tile_b), 16 << 20), 60 << 20))

    # Pad + cast activations (cheap; only per-call glue).
    x_bf16 = jnp.zeros((b_pad, k_pad), jnp.bfloat16)
    x_bf16 = x_bf16.at[:batch, :input_dim].set(x.astype(jnp.bfloat16))

    # Single-buffer grid-invariant operands.
    w_spec_kwargs = dict(pipeline_mode=pl.Buffered(1)) if nk == 1 else {}

    out = pl.pallas_call(
        _lr_kernel,
        out_shape=jax.ShapeDtypeStruct((b_pad, n_class), x.dtype),
        grid_spec=pltpu.PrefetchScalarGridSpec(
            num_scalar_prefetch=0,
            grid=(nb, nk),
            in_specs=[
                pl.BlockSpec((tile_b, tile_k), lambda i, k: (i, k)),
                pl.BlockSpec((tile_k, c_pad), lambda i, k: (k, 0),
                             **w_spec_kwargs),
                pl.BlockSpec((1, c_pad), lambda i, k: (0, 0),
                             pipeline_mode=pl.Buffered(1)),
            ],
            out_specs=pl.BlockSpec((tile_b, n_class), lambda i, k: (i, 0)),
            scratch_shapes=[pltpu.VMEM((tile_b, c_pad), jnp.float32)],
        ),
        compiler_params=pltpu.CompilerParams(
            dimension_semantics=("parallel", "arbitrary"),
            vmem_limit_bytes=vmem_limit,
        ),
    )(x_bf16, w_t, b2d)

    return out if b_pad == batch else out[:batch]


def reference_forward_f32(x, weight, bias):
    logits = x @ weight.T + bias
    return jax.nn.softmax(logits, axis=-1)


def reference_forward_bf16(x, weight, bias):
    # Mirrors the kernel's bf16-input / f32-accumulation matmul.
    xb = x.astype(jnp.bfloat16).astype(jnp.float32)
    wb = weight.astype(jnp.bfloat16).astype(jnp.float32)
    logits = xb @ wb.T + bias
    return jax.nn.softmax(logits, axis=-1)


if __name__ == "__main__":
    key = jax.random.PRNGKey(0)
    kx, kw, kb = jax.random.split(key, 3)

    batch, input_dim, n_class = 16, 32, 2

    x = jax.random.normal(kx, (batch, input_dim), dtype=jnp.float32)
    # nn.Linear shapes: weight (n_class, input_dim), bias (n_class,)
    weight = jax.random.normal(kw, (n_class, input_dim), dtype=jnp.float32) * 0.1
    bias = jax.random.normal(kb, (n_class,), dtype=jnp.float32) * 0.1

    params = prepare_params(weight, bias)          # done once, reused per call
    out = logistic_regression_forward(x, params)
    out = jax.block_until_ready(out)

    ref_bf16 = reference_forward_bf16(x, weight, bias)
    ref_f32 = reference_forward_f32(x, weight, bias)

    assert out.shape == (batch, n_class), out.shape
    # Tight check vs the bf16-input reference (matches kernel arithmetic).
    assert jnp.allclose(out, ref_bf16, atol=5e-3, rtol=5e-3), "mismatch vs bf16 reference"
    # Looser check vs the exact f32 reference (bf16 input rounding only).
    assert jnp.allclose(out, ref_f32, atol=2e-2, rtol=2e-2), "mismatch vs f32 reference"
    assert jnp.allclose(jnp.sum(out, axis=-1), 1.0, atol=1e-3), "softmax rows must sum to ~1"

    print("KERNEL_OK")
</pallas_src>

<mosaic_0001>
module attributes {stable_mosaic.version = 11 : i64} {
  func.func @_lr_kernel(%arg0: i32, %arg1: i32, %arg2: memref<16x128xbf16, #tpu.memory_space<vmem>>, %arg3: memref<128x128xbf16, #tpu.memory_space<vmem>>, %arg4: memref<1x128xf32, #tpu.memory_space<vmem>>, %arg5: memref<16x2xf32, #tpu.memory_space<vmem>>, %arg6: memref<16x128xf32, #tpu.memory_space<vmem>>) attributes {dimension_semantics = [#tpu.dimension_semantics<parallel>, #tpu.dimension_semantics<arbitrary>], iteration_bounds = array<i64: 1, 1>, scalar_prefetch = 0 : i64, scratch_operands = 1 : i64, tpu.core_type = #tpu.core_type<tc>, window_params = [{transform_indices = @transform_0, window_bounds = array<i64: 16, 128>}, {pipeline_mode = #tpu.pipeline_mode<synchronous>, transform_indices = @transform_1, window_bounds = array<i64: 128, 128>}, {pipeline_mode = #tpu.pipeline_mode<synchronous>, transform_indices = @transform_2, window_bounds = array<i64: 1, 128>}, {transform_indices = @transform_3, window_bounds = array<i64: 16, 2>}]} {
    %c0_i32 = arith.constant 0 : i32
    %0 = arith.cmpi eq, %arg1, %c0_i32 : i32
    %1 = arith.extui %0 : i1 to i32
    %c0_i32_0 = arith.constant 0 : i32
    %2 = arith.cmpi ne, %1, %c0_i32_0 : i32
    scf.if %2 {
      %cst_10 = arith.constant 0.000000e+00 : f32
      %12 = vector.broadcast %cst_10 : f32 to vector<16x128xf32>
      %c0_11 = arith.constant 0 : index
      %c0_12 = arith.constant 0 : index
      %13 = vector.load %arg6[%c0_11, %c0_12] : memref<16x128xf32, #tpu.memory_space<vmem>>, vector<16x128xf32>
      tpu.vector_store %arg6[%c0_11, %c0_12], %12 {strides = array<i32>} : memref<16x128xf32, #tpu.memory_space<vmem>>, vector<16x128xf32>,
    } else {
    }
    %c0 = arith.constant 0 : index
    %c0_1 = arith.constant 0 : index
    %3 = vector.load %arg6[%c0, %c0_1] : memref<16x128xf32, #tpu.memory_space<vmem>>, vector<16x128xf32>
    %c0_2 = arith.constant 0 : index
    %c0_3 = arith.constant 0 : index
    %4 = vector.load %arg2[%c0_2, %c0_3] : memref<16x128xbf16, #tpu.memory_space<vmem>>, vector<16x128xbf16>
    %c0_4 = arith.constant 0 : index
    %c0_5 = arith.constant 0 : index
    %5 = vector.load %arg3[%c0_4, %c0_5] : memref<128x128xbf16, #tpu.memory_space<vmem>>, vector<128x128xbf16>
    %cst = arith.constant dense<0.000000e+00> : vector<16x128xf32>
    %6 = tpu.matmul %4, %5, %cst {dimension_numbers = #tpu.dot_dimension_numbers<[1], [0], [0], [1], [0, 0, 1, 1], [], []>} : vector<16x128xbf16>, vector<128x128xbf16>, vector<16x128xf32> -> vector<16x128xf32>
    %7 = arith.addf %3, %6 : vector<16x128xf32>
    %c0_6 = arith.constant 0 : index
    %c0_7 = arith.constant 0 : index
    %8 = vector.load %arg6[%c0_6, %c0_7] : memref<16x128xf32, #tpu.memory_space<vmem>>, vector<16x128xf32>
    tpu.vector_store %arg6[%c0_6, %c0_7], %7 {strides = array<i32>} : memref<16x128xf32, #tpu.memory_space<vmem>>, vector<16x128xf32>,
    %c0_i32_8 = arith.constant 0 : i32
    %9 = arith.cmpi eq, %arg1, %c0_i32_8 : i32
    %10 = arith.extui %9 : i1 to i32
    %c0_i32_9 = arith.constant 0 : i32
    %11 = arith.cmpi ne, %10, %c0_i32_9 : i32
    scf.if %11 {
      %c0_10 = arith.constant 0 : index
      %c0_11 = arith.constant 0 : index
      %12 = vector.load %arg6[%c0_10, %c0_11] : memref<16x128xf32, #tpu.memory_space<vmem>>, vector<16x128xf32>
      %c0_12 = arith.constant 0 : index
      %c0_13 = arith.constant 0 : index
      %13 = vector.load %arg4[%c0_12, %c0_13] : memref<1x128xf32, #tpu.memory_space<vmem>>, vector<1x128xf32>
      %14 = vector.broadcast %13 : vector<1x128xf32> to vector<16x128xf32>
      %15 = arith.addf %12, %14 : vector<16x128xf32>
      %cst_14 = arith.constant dense<0xFF800000> : vector<16xf32>
      %16 = vector.multi_reduction <maximumf>, %15, %cst_14 [1] : vector<16x128xf32> to vector<16xf32>
      %17 = vector.shape_cast %16 : vector<16xf32> to vector<16x1xf32>
      %18 = vector.broadcast %17 : vector<16x1xf32> to vector<16x128xf32>
      %19 = arith.subf %15, %18 : vector<16x128xf32>
      %20 = math.exp %19 : vector<16x128xf32>
      %cst_15 = arith.constant dense<0.000000e+00> : vector<16xf32>
      %21 = vector.multi_reduction <add>, %20, %cst_15 [1] : vector<16x128xf32> to vector<16xf32>
      %22 = vector.shape_cast %21 : vector<16xf32> to vector<16x1xf32>
      %23 = tpu.reciprocal %22 {approx = true} : vector<16x1xf32> -> vector<16x1xf32>
      %24 = arith.mulf %22, %23 : vector<16x1xf32>
      %cst_16 = arith.constant 2.000000e+00 : f32
      %25 = vector.broadcast %cst_16 : f32 to vector<16x1xf32>
      %26 = arith.subf %25, %24 : vector<16x1xf32>
      %27 = arith.mulf %23, %26 : vector<16x1xf32>
      %28 = vector.broadcast %27 : vector<16x1xf32> to vector<16x128xf32>
      %29 = arith.mulf %20, %28 : vector<16x128xf32>
      %30 = vector.extract_strided_slice %29 {offsets = [0, 0], sizes = [16, 2], strides = [1, 1]} : vector<16x128xf32> to vector<16x2xf32>
      %c0_17 = arith.constant 0 : index
      %c0_18 = arith.constant 0 : index
      %31 = vector.load %arg5[%c0_17, %c0_18] : memref<16x2xf32, #tpu.memory_space<vmem>>, vector<16x2xf32>
      tpu.vector_store %arg5[%c0_17, %c0_18], %30 {strides = array<i32>} : memref<16x2xf32, #tpu.memory_space<vmem>>, vector<16x2xf32>,
    } else {
    }
    return
  }
  func.func @transform_0(%arg0: i32, %arg1: i32) -> (i32, i32) {
    %c0_i32 = arith.constant 0 : i32
    return %arg0, %arg1 : i32, i32
  }
  func.func @transform_1(%arg0: i32, %arg1: i32) -> (i32, i32) {
    %c0_i32 = arith.constant 0 : i32
    %c0_i32_0 = arith.constant 0 : i32
    return %arg1, %c0_i32 : i32, i32
  }
  func.func @transform_2(%arg0: i32, %arg1: i32) -> (i32, i32) {
    %c0_i32 = arith.constant 0 : i32
    %c0_i32_0 = arith.constant 0 : i32
    %c0_i32_1 = arith.constant 0 : i32
    return %c0_i32, %c0_i32_0 : i32, i32
  }
  func.func @transform_3(%arg0: i32, %arg1: i32) -> (i32, i32) {
    %c0_i32 = arith.constant 0 : i32
    %c0_i32_0 = arith.constant 0 : i32
    return %arg0, %c0_i32 : i32, i32
  }
}

</mosaic_0001>

<llo_original>
// kernel: tpu_custom_call.1
$region0: #{tpu_custom_call.1}
  #allocation0 [shape = 'u32[]', space=smem, size = 0x4, offset = 0x4, fixed_abs, tag = 'smem constant byte address 0x4 - core index']
  #allocation1 [shape = 'u32[144,128]{1,0:T(1,128)}', space=vmem, size = 0x12000, scoped, tag = 'internal scratch']
  #allocation2 [shape = 'f32[16,128]{1,0:T(8,128)}', space=vmem, size = 0x2000, scoped, tag = 'scratch operand']
  %s0 = inlined_call_operand.hbm [shape: bf16[16,128], index: 0, kind: input, shape index: {}]
  %s1 = inlined_call_operand.hbm [shape: bf16[128,128], index: 1, kind: input, shape index: {}]
  %s2 = inlined_call_operand.vmem [shape: f32[1,128], index: 2, kind: input, shape index: {}]
  %s3 = inlined_call_operand.vmem [shape: f32[16,2], index: 3, kind: output, shape index: {}]
  %s4 = sld [smem:[#allocation0]]
  $region38: #{tpu_custom_call.1} parent=0
    _
  %s6 = ssub.s32 1, %s4
  %s7 = scalar_select 0, %s6, %s4
  $region1: #{tpu_custom_call.1} parent=0
    #allocation3 [shape = 'u8[4096]{0}', space=vmem, size = 0x1000, scoped, tag = 'input window, operand 0, single buffered']
    #allocation4 [shape = 's32[1]{0}', space=sflag, size = 0x4, scoped, tag = 'scoped memory for tpu_custom_call.1']
    #allocation5 [shape = 'u8[32768]{0}', space=vmem, size = 0x8000, scoped, tag = 'input window, operand 1, single buffered']
    #allocation6 [shape = 's32[1]{0}', space=sflag, size = 0x4, scoped, tag = 'scoped memory for tpu_custom_call.1']
    %8 = vsyncpa [#allocation4], 0
    %9 = vsyncpa [#allocation6], 0
    // Predicated region
    $region2: #{tpu_custom_call.1} parent=1 // pred_check
      _
    $region3: #{tpu_custom_call.1} parent=1 // pred_check_branch
      %11 = sbr.rel (0) target = $region5
    $region4: #{tpu_custom_call.1} parent=1 // pred_region
      %s13 = ssub.s32 128, 128
      %14 = vsyncadd [#allocation4], %s13
      %s15 = sshll.u32 [#allocation3], 4
      %s16 = int_to_ptr.vmem [resolvable:$true] %s15
      %21 = dma.hbm_to_vmem [thread:$0]  %s0, 128, %s16, [#allocation4], 64, 64, 4
    $region5: #{tpu_custom_call.1} parent=1 // pred_fallthru
      _
    // Predicated region
    $region6: #{tpu_custom_call.1} parent=1 // pred_check
      _
    $region7: #{tpu_custom_call.1} parent=1 // pred_check_branch
      %23 = sbr.rel (0) target = $region9
    $region8: #{tpu_custom_call.1} parent=1 // pred_region
      %s25 = ssub.s32 1024, 1024
      %26 = vsyncadd [#allocation6], %s25
      %s27 = sshll.u32 [#allocation5], 4
      %s28 = int_to_ptr.vmem [resolvable:$true] %s27
      %33 = dma.hbm_to_vmem [thread:$0]  %s1, 1024, %s28, [#allocation6], 64, 64, 4
    $region9: #{tpu_custom_call.1} parent=1 // pred_fallthru
      _
    // Predicated region
    $region10: #{tpu_custom_call.1} parent=1 // pred_check
      _
    $region11: #{tpu_custom_call.1} parent=1 // pred_check_branch
      %35 = sbr.rel (0) target = $region13
    $region12: #{tpu_custom_call.1} parent=1 // pred_region
      _
    $region13: #{tpu_custom_call.1} parent=1 // pred_fallthru
      _
    // Predicated region
    $region14: #{tpu_custom_call.1} parent=1 // pred_check
      _
    $region15: #{tpu_custom_call.1} parent=1 // pred_check_branch
      %37 = sbr.rel (0) target = $region17
    $region16: #{tpu_custom_call.1} parent=1 // pred_region
      %38 = dma.done [#allocation4], 128
    $region17: #{tpu_custom_call.1} parent=1 // pred_fallthru
      _
    // Predicated region
    $region18: #{tpu_custom_call.1} parent=1 // pred_check
      _
    $region19: #{tpu_custom_call.1} parent=1 // pred_check_branch
      %40 = sbr.rel (0) target = $region21
    $region20: #{tpu_custom_call.1} parent=1 // pred_region
      %41 = dma.done [#allocation6], 1024
    $region21: #{tpu_custom_call.1} parent=1 // pred_fallthru
      _
    %p43 = scmp.eq.s32.totalorder 0, 0
    // Predicated region
    $region22: #{tpu_custom_call.1} parent=1 // pred_check
      %p44 = pneg %p43
    $region23: #{tpu_custom_call.1} parent=1 // pred_check_branch
      %46 = sbr.rel (%p44) target = $region25
    $region24: #{tpu_custom_call.1} parent=1 // pred_region
      %47 = vst [vmem:[#allocation2] sm:$0xff] 0.0
      %48 = vst [vmem:[#allocation2 + $0x8] sm:$0xff] 0.0
    $region25: #{tpu_custom_call.1} parent=1 // pred_fallthru
      _
    %v49 = vld [vmem:[#allocation2] sm:$0xff]
    %v50 = vld [vmem:[#allocation2 + $0x8] sm:$0xff]
    %v51 = vld [vmem:[#allocation3] sm:$0xf]
    %v52 = vld [vmem:[#allocation3 + $0x4] sm:$0xf]
    %v53 = vld [vmem:[#allocation5] sm:$0xf]
    %v54 = vld [vmem:[#allocation5 + $0x4] sm:$0xf]
    %v55 = vld [vmem:[#allocation5 + $0x8] sm:$0xf]
    %v56 = vld [vmem:[#allocation5 + $0xc] sm:$0xf]
    %v57 = vld [vmem:[#allocation5 + $0x10] sm:$0xf]
    %v58 = vld [vmem:[#allocation5 + $0x14] sm:$0xf]
    %v59 = vld [vmem:[#allocation5 + $0x18] sm:$0xf]
    %v60 = vld [vmem:[#allocation5 + $0x1c] sm:$0xf]
    %v61 = vld [vmem:[#allocation5 + $0x20] sm:$0xf]
    %v62 = vld [vmem:[#allocation5 + $0x24] sm:$0xf]
    %v63 = vld [vmem:[#allocation5 + $0x28] sm:$0xf]
    %v64 = vld [vmem:[#allocation5 + $0x2c] sm:$0xf]
    %v65 = vld [vmem:[#allocation5 + $0x30] sm:$0xf]
    %v66 = vld [vmem:[#allocation5 + $0x34] sm:$0xf]
    %v67 = vld [vmem:[#allocation5 + $0x38] sm:$0xf]
    %v68 = vld [vmem:[#allocation5 + $0x3c] sm:$0xf]
    %v71 = vunpack.c.l.b16 %v51
    %v72 = vunpack.c.l.b16 %v52
    %v73 = vpack.c.b16 %v72, %v71
    %v91 = vunpack.c.l.b16 %v53
    %v92 = vunpack.c.l.b16 %v54
    %v93 = vunpack.c.l.b16 %v55
    %v94 = vunpack.c.l.b16 %v56
    %v95 = vunpack.c.l.b16 %v57
    %v96 = vunpack.c.l.b16 %v58
    %v97 = vunpack.c.l.b16 %v59
    %v98 = vunpack.c.l.b16 %v60
    %v99 = vunpack.c.l.b16 %v61
    %v100 = vunpack.c.l.b16 %v62
    %v101 = vunpack.c.l.b16 %v63
    %v102 = vunpack.c.l.b16 %v64
    %v103 = vunpack.c.l.b16 %v65
    %v104 = vunpack.c.l.b16 %v66
    %v105 = vunpack.c.l.b16 %v67
    %v106 = vunpack.c.l.b16 %v68
    %v107 = vpack.c.b16 %v92, %v91
    %v108 = vpack.c.b16 %v94, %v93
    %v109 = vpack.c.b16 %v96, %v95
    %v110 = vpack.c.b16 %v98, %v97
    %v111 = vpack.c.b16 %v100, %v99
    %v112 = vpack.c.b16 %v102, %v101
    %v113 = vpack.c.b16 %v104, %v103
    %v114 = vpack.c.b16 %v106, %v105
    %123 = vmatprep.subr.bf16.mxu0 0
    %124 = vmatpush1.bf16.msra.mxu0 %v114
    %125 = vmatprep.subr.bf16.mxu0 0
    %126 = vmatpush1.bf16.msra.mxu0 %v113
    %127 = vmatprep.subr.bf16.mxu0 0
    %128 = vmatpush1.bf16.msra.mxu0 %v112
    %129 = vmatprep.subr.bf16.mxu0 0
    %130 = vmatpush1.bf16.msra.mxu0 %v111
    %131 = vmatprep.subr.bf16.mxu0 0
    %132 = vmatpush1.bf16.msra.mxu0 %v110
    %133 = vmatprep.subr.bf16.mxu0 0
    %134 = vmatpush1.bf16.msra.mxu0 %v109
    %135 = vmatprep.subr.bf16.mxu0 0
    %136 = vmatpush1.bf16.msra.mxu0 %v108
    %137 = vmatprep.subr.bf16.mxu0 0
    %138 = vmatpush1.bf16.msra.mxu0 %v107
    %139 = vmatprep.subr.bf16.mxu0 0
    %140 = vmatpush2.bf16.msra.mxu0 0
    %141 = vmatprep.subr.bf16.mxu0 0
    %142 = vmatpush2.bf16.msra.mxu0 0
    %143 = vmatprep.subr.bf16.mxu0 0
    %144 = vmatpush2.bf16.msra.mxu0 0
    %145 = vmatprep.subr.bf16.mxu0 0
    %146 = vmatpush2.bf16.msra.mxu0 0
    %147 = vmatprep.subr.bf16.mxu0 0
    %148 = vmatpush2.bf16.msra.mxu0 0
    %149 = vmatprep.subr.bf16.mxu0 0
    %150 = vmatpush2.bf16.msra.mxu0 0
    %151 = vmatprep.subr.bf16.mxu0 0
    %152 = vmatpush2.bf16.msra.mxu0 0
    %153 = vmatprep.subr.bf16.mxu0 0
    %154 = vmatpush2.bf16.msra.mxu0 0
    %155 = vmatprep.mubr.bf16.mxu0 0
    %156 = vmatmul.mubr.bf16.gmra.mxu0 %v73
    %v157 = vpop.f32.mrf.mxu0
    %v158 = vadd.f32 0.0, %v157
    %v159 = vpop.f32.mrf.mxu0
    %v160 = vpop.f32.mrf.mxu0
    %v161 = vadd.f32 0.0, %v160
    %v162 = vpop.f32.mrf.mxu0
    %163 = vdwg.mxu0
    %v164 = vadd.f32 %v49, %v158
    %v165 = vadd.f32 %v50, %v161
    %166 = vst [vmem:[#allocation2] sm:$0xff] %v164
    %167 = vst [vmem:[#allocation2 + $0x8] sm:$0xff] %v165
    // Predicated region
    $region26: #{tpu_custom_call.1} parent=1 // pred_check
      %p168 = pneg %p43
    $region27: #{tpu_custom_call.1} parent=1 // pred_check_branch
      %170 = sbr.rel (%p168) target = $region29
    $region28: #{tpu_custom_call.1} parent=1 // pred_region
      %v171 = vld [vmem:[#allocation2] sm:$0xff]
      %v172 = vld [vmem:[#allocation2 + $0x8] sm:$0xff]
      %v173 = vld [vmem:[%s2] sm:$0x1]
      %v175 = vlaneseq
      %v176 = vshrl.u32 %v175, 7
      %v177 = vsub.s32 0, %v176
      %v178 = vrot.slane %v173, %v177
      %v180 = vadd.f32 %v171, %v178
      %v181 = vadd.f32 %v172, %v178
      %182 = vmax.xlane.f32.xlu0 %v180
      %v183 = vpop.xlane.xlu0 %182
      %184 = vmax.xlane.f32.xlu0 %v181
      %v185 = vpop.xlane.xlu0 %184
      %v186 = vsub.f32 %v180, %v183
      %v187 = vsub.f32 %v181, %v185
      %v188 = vmul.f32 %v186, 1.442695
      %v189 = vpow.pop %v188
      %v190 = vmul.f32 %v187, 1.442695
      %v191 = vpow.pop %v190
      %192 = vadd.xlane.f32.xlu0 %v189
      %v193 = vpop.xlane.xlu0 %192
      %194 = vadd.xlane.f32.xlu0 %v191
      %v195 = vpop.xlane.xlu0 %194
      %v196 = vrcp.pop %v193
      %v197 = vrcp.pop %v195
      %v198 = vmul.f32 %v193, %v196
      %v199 = vmul.f32 %v195, %v197
      %v200 = vsub.f32 2.0, %v198
      %v201 = vsub.f32 2.0, %v199
      %v202 = vmul.f32 %v196, %v200
      %v203 = vmul.f32 %v197, %v201
      %v204 = vmul.f32 %v189, %v202
      %v205 = vmul.f32 %v191, %v203
      %vm206 = vcmask 15360
      %207 = vst.msk [vmem:[%s3] sm:$0xff] %vm206, %v204
      %208 = vst.msk [vmem:[%s3 + $0x8] sm:$0xff] %vm206, %v205
    $region29: #{tpu_custom_call.1} parent=1 // pred_fallthru
      _
    // Predicated region
    $region30: #{tpu_custom_call.1} parent=1 // pred_check
      _
    $region31: #{tpu_custom_call.1} parent=1 // pred_check_branch
      %210 = sbr.rel (0) target = $region33
    $region32: #{tpu_custom_call.1} parent=1 // pred_region
      _
    $region33: #{tpu_custom_call.1} parent=1 // pred_fallthru
      _
    // Predicated region
    $region34: #{tpu_custom_call.1} parent=1 // pred_check
      _
    $region35: #{tpu_custom_call.1} parent=1 // pred_check_branch
      %212 = sbr.rel (0) target = $region37
    $region36: #{tpu_custom_call.1} parent=1 // pred_region
      _
    $region37: #{tpu_custom_call.1} parent=1 // pred_fallthru
      _
    %213 = vsyncpa [#allocation4], 1
    %214 = vsyncpa [#allocation6], 1

</llo_original>
